<compile_context>
chip_gen: v7x
topology: tpu7x:2x2x1
jax: 0.10.0
libtpu: 0.0.40
codegen_flags: <defaults>
</compile_context>

<pallas_src>
import math

import jax
import jax.numpy as jnp
from jax import lax
from jax.experimental import pallas as pl
from jax.experimental.pallas import tpu as pltpu


def _round_up(a, m):
    return ((a + m - 1) // m) * m


def _vmem_capacity_bytes():
    """Best-effort physical VMEM query; conservative (v7x-sized) fallback."""
    try:
        info = pltpu.get_tpu_info()
        for name in ("vmem_capacity_bytes", "vmem_size_bytes", "vmem_bytes"):
            v = getattr(info, name, None)
            if v:
                return int(v)
    except Exception:
        pass
    return 64 * 1024 * 1024


# ---------------------------------------------------------------------------
# Pallas kernels: fused  patches @ weight  + conv bias + LayerNorm.
# ---------------------------------------------------------------------------
def _make_patch_embed_kernel(ln_by_matmul, inv_group_dim, ln_dot_dtype):
    if ln_by_matmul:
        def kernel(p_ref, w_ref, s_ref, pb_ref, o_ref):
            # p_ref : (tile_p, Kp)  packed im2col rows (G tokens per row)
            # w_ref : (Kp, Ep)      block-diagonal projection weight (resident)
            # s_ref : (Ep, Ep)      0/1 token-group mask (resident, ln_dot_dtype)
            # pb_ref: (8, Ep)       row0 conv bias, row1 LN gamma, row2 LN beta (f32)
            # o_ref : (tile_p, Ep)  packed output tokens
            y = jnp.dot(p_ref[...], w_ref[...], preferred_element_type=jnp.float32)
            pb = pb_ref[...]
            y = y + pb[0:1, :]                                  # conv bias
            s = s_ref[...]
            # Segmented (per packed token) mean/var via tiny MXU matmuls keeps the
            # 128-lane rows dense and the store unmasked.  Operands in ln_dot_dtype
            # (bf16 in the default path -> full MXU rate on v5e), accumulate in f32,
            # the exact 1/E scale applied in f32 afterwards.
            mean = jnp.dot(y.astype(ln_dot_dtype), s,
                           preferred_element_type=jnp.float32) * inv_group_dim
            d = y - mean
            var = jnp.dot((d * d).astype(ln_dot_dtype), s,
                          preferred_element_type=jnp.float32) * inv_group_dim
            yhat = d * lax.rsqrt(var + 1e-5)                    # nn.LayerNorm eps
            o_ref[...] = (yhat * pb[1:2, :] + pb[2:3, :]).astype(o_ref.dtype)

        return kernel

    def kernel(p_ref, w_ref, pb_ref, o_ref):
        y = jnp.dot(p_ref[...], w_ref[...], preferred_element_type=jnp.float32)
        pb = pb_ref[...]
        y = y + pb[0:1, :]
        mean = jnp.mean(y, axis=-1, keepdims=True)
        d = y - mean
        var = jnp.mean(d * d, axis=-1, keepdims=True)
        yhat = d * lax.rsqrt(var + 1e-5)
        o_ref[...] = (yhat * pb[1:2, :] + pb[2:3, :]).astype(o_ref.dtype)

    return kernel


# ---------------------------------------------------------------------------
# JAX glue: im2col (pad + 49 strided slices), row-major over (b, oh, ow).
# With allow_input_fusion on the patches operand, XLA may fuse this producer
# into the pallas_call instead of materializing it in HBM.
# ---------------------------------------------------------------------------
def _im2col(x, kh, kw, stride, pad):
    """x: (B, C, H, W) -> patches (B*Ho*Wo, C*kh*kw), plus (Ho, Wo)."""
    B, C, H, W = x.shape
    xpad = jnp.pad(x, ((0, 0), (0, 0), (pad, pad), (pad, pad)))
    Ho = (H + 2 * pad - kh) // stride + 1
    Wo = (W + 2 * pad - kw) // stride + 1
    cols = []
    for i in range(kh):
        for j in range(kw):
            cols.append(xpad[:, :, i:i + stride * Ho:stride, j:j + stride * Wo:stride])
    # (B, C, kh*kw, Ho, Wo): K is row-major over (c, kh, kw) like the conv weight.
    patches = jnp.stack(cols, axis=2).reshape(B, C * kh * kw, Ho, Wo)
    patches = jnp.transpose(patches, (0, 2, 3, 1)).reshape(B * Ho * Wo, C * kh * kw)
    return patches, Ho, Wo


# ---------------------------------------------------------------------------
# Wrapper
# ---------------------------------------------------------------------------
def patch_embed_forward(x, params, *, patch_size=4, block_rows=8192,
                        compute_dtype=jnp.bfloat16, out_dtype=jnp.float32):
    """x: (B, C, H, W) float32 -- the dim==4 / patch_size==4 path of PatchEmbed."""
    # TODO(synk): patch_size==2 branch and the dim==3 (pre-norm) input path of the
    # PyTorch module are not implemented here.
    assert patch_size == 4, "only the patch_size=4 (7x7 / stride-4) branch is implemented"

    w_conv = params["proj_w"]       # (E, C, 7, 7) PyTorch Conv2d layout
    b_conv = params["proj_b"]       # (E,)
    gamma = params["ln_g"]          # (E,)
    beta = params["ln_b"]           # (E,)
    E, C, KH, KW = w_conv.shape
    K = C * KH * KW
    B = x.shape[0]

    compute_dtype = jnp.dtype(compute_dtype)
    out_dtype = jnp.dtype(out_dtype)
    in_item = compute_dtype.itemsize
    out_item = out_dtype.itemsize
    sub = 16 if (in_item == 2 or out_item == 2) else 8   # full packed vregs for bf16

    # im2col materialized directly in the matmul compute dtype (bf16 default).
    patches, Ho, Wo = _im2col(x.astype(compute_dtype), KH, KW, stride=4, pad=3)
    N = patches.shape[0]            # B * Ho * Wo tokens

    # ---- lane-dense packing: smallest G with (G*E) % 128 == 0 (lcm-based) -----
    # Covers DaViT's embed_dim=96 (G=4, Ep=384) as well as 32/64/etc.  N is padded
    # up to a multiple of G (padded rows are finite garbage and sliced off below).
    G = 1
    g = math.lcm(E, 128) // E
    if 1 < g <= 16:
        G = g
    N_pad = _round_up(N, G)
    if N_pad != N:
        patches = jnp.pad(patches, ((0, N_pad - N), (0, 0)))
    rows_p, Kp, Ep = N_pad // G, G * K, G * E
    ln_by_matmul = G > 1

    patches_p = patches.reshape(rows_p, Kp)                     # free reshape view
    w_mat = w_conv.reshape(E, K).T.astype(compute_dtype)        # (K, E)
    if G > 1:
        w_bd = jnp.kron(jnp.eye(G, dtype=compute_dtype), w_mat)  # (Kp, Ep) block-diag
        # 0/1 block mask (exact in bf16); the 1/E scale is applied in-kernel in f32.
        s_mat = jnp.kron(jnp.eye(G, dtype=jnp.float32),
                         jnp.ones((E, E), jnp.float32)).astype(compute_dtype)
    else:
        w_bd = w_mat
        s_mat = None
    pb = jnp.zeros((8, Ep), jnp.float32)
    pb = pb.at[0].set(jnp.tile(b_conv.astype(jnp.float32), G))
    pb = pb.at[1].set(jnp.tile(gamma.astype(jnp.float32), G))
    pb = pb.at[2].set(jnp.tile(beta.astype(jnp.float32), G))

    # ---- row tile: big, generation-aware VMEM budget ---------------------------
    lane = 128
    kp_pad = _round_up(Kp, lane)
    ep_pad = _round_up(Ep, lane)

    def _vmem_bytes(tp):
        stream = tp * kp_pad * in_item + tp * ep_pad * out_item       # per-step LHS+out
        resident = (Kp * ep_pad * in_item + 8 * ep_pad * 4
                    + (Ep * ep_pad * in_item if ln_by_matmul else 0))
        interm = 3 * tp * ep_pad * 4                                  # f32 y/d/temp
        return 2 * stream + 2 * resident + interm                     # double-buffered

    vmem_cap = _vmem_capacity_bytes()
    # ~25 MiB on v7x (64 MiB VMEM), ~51 MiB on v5e/v6e (128 MiB VMEM).
    vmem_budget = min(int(vmem_cap * 0.40), 52 * 1024 * 1024)
    vmem_limit = int(min(vmem_cap * 0.60, 96 * 1024 * 1024))

    tile_p = _round_up(max(block_rows // G, sub), sub)                # tokens -> rows
    tile_p = min(tile_p, _round_up(rows_p, sub))                      # not above problem
    tile_p = min(tile_p, max(sub, _round_up(pl.cdiv(rows_p, 8), sub)))  # ~>=8 grid steps
    while tile_p > sub and _vmem_bytes(tile_p) > vmem_budget:
        tile_p = max(sub, _round_up(tile_p // 2, sub))

    grid = (pl.cdiv(rows_p, tile_p),)   # ragged last tile handled by Pallas masking

    # ---- operands / specs (segment-mean matrix only when packing is active) ----
    operands = [patches_p, w_bd]
    in_specs = [pl.BlockSpec((tile_p, Kp), lambda i: (i, 0)),   # streaming patch rows
                pl.BlockSpec((Kp, Ep), lambda i: (0, 0))]       # resident weight
    if ln_by_matmul:
        operands.append(s_mat)
        in_specs.append(pl.BlockSpec((Ep, Ep), lambda i: (0, 0)))
    operands.append(pb)
    in_specs.append(pl.BlockSpec((8, Ep), lambda i: (0, 0)))

    flops = 2 * rows_p * Kp * Ep + 10 * rows_p * Ep
    if ln_by_matmul:
        flops += 2 * 2 * rows_p * Ep * Ep
    bytes_accessed = (patches_p.size * in_item + w_bd.size * in_item
                      + 8 * Ep * 4 + rows_p * Ep * out_item
                      + (s_mat.size * in_item if ln_by_matmul else 0))
    transcendentals = rows_p * (Ep if ln_by_matmul else 1)            # dense rsqrt

    out = pl.pallas_call(
        _make_patch_embed_kernel(ln_by_matmul, 1.0 / E, compute_dtype),
        out_shape=jax.ShapeDtypeStruct((rows_p, Ep), out_dtype),
        grid_spec=pltpu.PrefetchScalarGridSpec(
            num_scalar_prefetch=0,
            grid=grid,
            in_specs=in_specs,
            out_specs=pl.BlockSpec((tile_p, Ep), lambda i: (i, 0)),
        ),
        compiler_params=pltpu.CompilerParams(
            dimension_semantics=("parallel",),
            vmem_limit_bytes=vmem_limit,
            # Let XLA fuse the im2col producer into the patches operand instead of
            # materializing it in HBM (advisory; no-op if XLA declines).
            allow_input_fusion=[True] + [False] * (len(operands) - 1)),
        cost_estimate=pl.CostEstimate(
            flops=int(flops),
            transcendentals=int(transcendentals),
            bytes_accessed=int(bytes_accessed)),
    )(*operands)

    # (rows_p, Ep) is byte-identical to (N_pad, E) row-major; drop padded tokens.
    tokens = out.reshape(N_pad, E)[:N].reshape(B, Ho * Wo, E)
    return tokens, Ho, Wo


# ---------------------------------------------------------------------------
# Pure-JAX reference (lax.conv + LayerNorm) for correctness checks.
# ---------------------------------------------------------------------------
def _reference(x, params):
    w_conv, b_conv = params["proj_w"], params["proj_b"]
    gamma, beta = params["ln_g"], params["ln_b"]
    y = lax.conv_general_dilated(
        x, w_conv, window_strides=(4, 4), padding=((3, 3), (3, 3)),
        dimension_numbers=("NCHW", "OIHW", "NCHW"))
    y = y + b_conv[None, :, None, None]
    B, E, Ho, Wo = y.shape
    y = y.reshape(B, E, Ho * Wo).transpose(0, 2, 1)   # (B, HW, E)
    mean = y.mean(-1, keepdims=True)
    var = ((y - mean) ** 2).mean(-1, keepdims=True)
    y = (y - mean) * lax.rsqrt(var + 1e-5) * gamma + beta
    return y, Ho, Wo


if __name__ == "__main__":
    key = jax.random.PRNGKey(0)

    def make_params(k, E, C=3):
        kw_, kb, kg, kbt = jax.random.split(k, 4)
        return {
            "proj_w": jax.random.normal(kw_, (E, C, 7, 7), dtype=jnp.float32) * 0.05,
            "proj_b": jax.random.normal(kb, (E,), dtype=jnp.float32) * 0.02,
            "ln_g": jnp.ones((E,), jnp.float32) + 0.1 * jax.random.normal(kg, (E,), jnp.float32),
            "ln_b": 0.1 * jax.random.normal(kbt, (E,), jnp.float32),
        }

    k1, k2, k3, k4 = jax.random.split(key, 4)

    # --- Case 1: embed_dim=32 (G=4 packing), 32x32 input --------------------
    B, C, H, W, E = 2, 3, 32, 32, 32
    x = jax.random.normal(k1, (B, C, H, W), dtype=jnp.float32)
    params = make_params(k2, E)
    ref_tokens, rHo, rWo = _reference(x, params)

    # f32 matmul-input path: strict numerical check.
    tok_f32, Ho, Wo = patch_embed_forward(x, params, compute_dtype=jnp.float32)
    tok_f32 = jax.block_until_ready(tok_f32)
    assert (Ho, Wo) == (rHo, rWo)
    assert tok_f32.shape == (B, Ho * Wo, E)
    assert float(jnp.max(jnp.abs(tok_f32 - ref_tokens))) < 2e-3

    # Default bf16 matmul-input path (halved HBM stream), f32 output.
    tok_bf16, _, _ = patch_embed_forward(x, params)
    tok_bf16 = jax.block_until_ready(tok_bf16)
    assert tok_bf16.shape == (B, Ho * Wo, E)
    assert float(jnp.max(jnp.abs(tok_bf16 - ref_tokens))) < 1.2e-1

    # bf16 output option (saves ~15% HBM traffic when downstream blocks are bf16).
    tok_bf16o, _, _ = patch_embed_forward(x, params, out_dtype=jnp.bfloat16)
    tok_bf16o = jax.block_until_ready(tok_bf16o)
    assert tok_bf16o.dtype == jnp.bfloat16
    assert float(jnp.max(jnp.abs(tok_bf16o.astype(jnp.float32) - ref_tokens))) < 1.5e-1

    # --- Case 2: DaViT's common embed_dim=96 (lcm packing, G=4) -------------
    # H=W=20 gives N=50 tokens, exercising the pad-to-multiple-of-G path too.
    B2, H2, W2, E2 = 2, 20, 20, 96
    x2 = jax.random.normal(k3, (B2, C, H2, W2), dtype=jnp.float32)
    params2 = make_params(k4, E2)
    ref2, rHo2, rWo2 = _reference(x2, params2)
    tok2, Ho2, Wo2 = patch_embed_forward(x2, params2, compute_dtype=jnp.float32)
    tok2 = jax.block_until_ready(tok2)
    assert (Ho2, Wo2) == (rHo2, rWo2)
    assert tok2.shape == (B2, Ho2 * Wo2, E2)
    assert float(jnp.max(jnp.abs(tok2 - ref2))) < 2e-3

    print("KERNEL_OK")
</pallas_src>

<mosaic_0001>
module attributes {stable_mosaic.version = 11 : i64} {
  func.func @kernel(%arg0: i32, %arg1: memref<8x588xf32, #tpu.memory_space<vmem>>, %arg2: memref<588x128xf32, #tpu.memory_space<vmem>>, %arg3: memref<128x128xf32, #tpu.memory_space<vmem>>, %arg4: memref<8x128xf32, #tpu.memory_space<vmem>>, %arg5: memref<8x128xf32, #tpu.memory_space<vmem>>) attributes {dimension_semantics = [#tpu.dimension_semantics<parallel>], iteration_bounds = array<i64: 4>, scalar_prefetch = 0 : i64, scratch_operands = 0 : i64, tpu.core_type = #tpu.core_type<tc>, window_params = [{transform_indices = @transform_0, window_bounds = array<i64: 8, 588>}, {pipeline_mode = #tpu.pipeline_mode<synchronous>, transform_indices = @transform_1, window_bounds = array<i64: 588, 128>}, {pipeline_mode = #tpu.pipeline_mode<synchronous>, transform_indices = @transform_2, window_bounds = array<i64: 128, 128>}, {pipeline_mode = #tpu.pipeline_mode<synchronous>, transform_indices = @transform_3, window_bounds = array<i64: 8, 128>}, {transform_indices = @transform_4, window_bounds = array<i64: 8, 128>}]} {
    %c0 = arith.constant 0 : index
    %c0_0 = arith.constant 0 : index
    %0 = vector.load %arg1[%c0, %c0_0] : memref<8x588xf32, #tpu.memory_space<vmem>>, vector<8x588xf32>
    %c0_1 = arith.constant 0 : index
    %c0_2 = arith.constant 0 : index
    %1 = vector.load %arg2[%c0_1, %c0_2] : memref<588x128xf32, #tpu.memory_space<vmem>>, vector<588x128xf32>
    %cst = arith.constant dense<0.000000e+00> : vector<8x128xf32>
    %2 = tpu.matmul %0, %1, %cst {dimension_numbers = #tpu.dot_dimension_numbers<[1], [0], [0], [1], [0, 0, 1, 1], [], []>} : vector<8x588xf32>, vector<588x128xf32>, vector<8x128xf32> -> vector<8x128xf32>
    %c0_3 = arith.constant 0 : index
    %c0_4 = arith.constant 0 : index
    %3 = vector.load %arg4[%c0_3, %c0_4] : memref<8x128xf32, #tpu.memory_space<vmem>>, vector<8x128xf32>
    %4 = vector.extract_strided_slice %3 {offsets = [0, 0], sizes = [1, 128], strides = [1, 1]} : vector<8x128xf32> to vector<1x128xf32>
    %5 = vector.broadcast %4 : vector<1x128xf32> to vector<8x128xf32>
    %6 = arith.addf %2, %5 : vector<8x128xf32>
    %c0_5 = arith.constant 0 : index
    %c0_6 = arith.constant 0 : index
    %7 = vector.load %arg3[%c0_5, %c0_6] : memref<128x128xf32, #tpu.memory_space<vmem>>, vector<128x128xf32>
    %cst_7 = arith.constant dense<0.000000e+00> : vector<8x128xf32>
    %8 = tpu.matmul %6, %7, %cst_7 {dimension_numbers = #tpu.dot_dimension_numbers<[1], [0], [0], [1], [0, 0, 1, 1], [], []>} : vector<8x128xf32>, vector<128x128xf32>, vector<8x128xf32> -> vector<8x128xf32>
    %cst_8 = arith.constant 3.125000e-02 : f32
    %9 = vector.broadcast %cst_8 : f32 to vector<8x128xf32>
    %10 = arith.mulf %8, %9 : vector<8x128xf32>
    %11 = arith.subf %6, %10 : vector<8x128xf32>
    %12 = arith.mulf %11, %11 : vector<8x128xf32>
    %cst_9 = arith.constant dense<0.000000e+00> : vector<8x128xf32>
    %13 = tpu.matmul %12, %7, %cst_9 {dimension_numbers = #tpu.dot_dimension_numbers<[1], [0], [0], [1], [0, 0, 1, 1], [], []>} : vector<8x128xf32>, vector<128x128xf32>, vector<8x128xf32> -> vector<8x128xf32>
    %cst_10 = arith.constant 3.125000e-02 : f32
    %14 = vector.broadcast %cst_10 : f32 to vector<8x128xf32>
    %15 = arith.mulf %13, %14 : vector<8x128xf32>
    %cst_11 = arith.constant 9.99999974E-6 : f32
    %16 = vector.broadcast %cst_11 : f32 to vector<8x128xf32>
    %17 = arith.addf %15, %16 : vector<8x128xf32>
    %18 = math.rsqrt %17 : vector<8x128xf32>
    %19 = arith.mulf %11, %18 : vector<8x128xf32>
    %20 = vector.extract_strided_slice %3 {offsets = [1, 0], sizes = [1, 128], strides = [1, 1]} : vector<8x128xf32> to vector<1x128xf32>
    %21 = vector.broadcast %20 : vector<1x128xf32> to vector<8x128xf32>
    %22 = arith.mulf %19, %21 : vector<8x128xf32>
    %23 = vector.extract_strided_slice %3 {offsets = [2, 0], sizes = [1, 128], strides = [1, 1]} : vector<8x128xf32> to vector<1x128xf32>
    %24 = vector.broadcast %23 : vector<1x128xf32> to vector<8x128xf32>
    %25 = arith.addf %22, %24 : vector<8x128xf32>
    %c0_12 = arith.constant 0 : index
    %c0_13 = arith.constant 0 : index
    %26 = vector.load %arg5[%c0_12, %c0_13] : memref<8x128xf32, #tpu.memory_space<vmem>>, vector<8x128xf32>
    tpu.vector_store %arg5[%c0_12, %c0_13], %25 {strides = array<i32>} : memref<8x128xf32, #tpu.memory_space<vmem>>, vector<8x128xf32>,
    return
  }
  func.func @transform_0(%arg0: i32) -> (i32, i32) {
    %c0_i32 = arith.constant 0 : i32
    %c0_i32_0 = arith.constant 0 : i32
    return %arg0, %c0_i32 : i32, i32
  }
  func.func @transform_1(%arg0: i32) -> (i32, i32) {
    %c0_i32 = arith.constant 0 : i32
    %c0_i32_0 = arith.constant 0 : i32
    %c0_i32_1 = arith.constant 0 : i32
    return %c0_i32, %c0_i32_0 : i32, i32
  }
  func.func @transform_2(%arg0: i32) -> (i32, i32) {
    %c0_i32 = arith.constant 0 : i32
    %c0_i32_0 = arith.constant 0 : i32
    %c0_i32_1 = arith.constant 0 : i32
    return %c0_i32, %c0_i32_0 : i32, i32
  }
  func.func @transform_3(%arg0: i32) -> (i32, i32) {
    %c0_i32 = arith.constant 0 : i32
    %c0_i32_0 = arith.constant 0 : i32
    %c0_i32_1 = arith.constant 0 : i32
    return %c0_i32, %c0_i32_0 : i32, i32
  }
  func.func @transform_4(%arg0: i32) -> (i32, i32) {
    %c0_i32 = arith.constant 0 : i32
    %c0_i32_0 = arith.constant 0 : i32
    return %arg0, %c0_i32 : i32, i32
  }
}

</mosaic_0001>

<llo_original>
// kernel: tpu_custom_call.1
$region0: #{tpu_custom_call.1}
  #allocation0 [shape = 'u32[]', space=smem, size = 0x4, offset = 0x4, fixed_abs, tag = 'smem constant byte address 0x4 - core index']
  #allocation1 [shape = 'u32[144,128]{1,0:T(1,128)}', space=vmem, size = 0x12000, scoped, tag = 'internal scratch']
  %s0 = inlined_call_operand.hbm [shape: f32[32,588], index: 0, kind: input, shape index: {}]
  %s1 = inlined_call_operand.hbm [shape: f32[588,128], index: 1, kind: input, shape index: {}]
  %s2 = inlined_call_operand.hbm [shape: f32[128,128], index: 2, kind: input, shape index: {}]
  %s3 = inlined_call_operand.vmem [shape: f32[8,128], index: 3, kind: input, shape index: {}]
  %s4 = inlined_call_operand.hbm [shape: f32[32,128], index: 4, kind: output, shape index: {}]
  %s5 = sld [smem:[#allocation0]]
  $region61: #{tpu_custom_call.1} parent=0
    _
  %s7 = ssub.s32 1, %s5
  %s8 = scalar_select 0, %s7, %s5
  $region1: #{tpu_custom_call.1} parent=0
    #allocation2 [shape = 'u8[40960]{0}', space=vmem, size = 0xa000, scoped, tag = 'input window, operand 0']
    #allocation3 [shape = 's32[2]{0}', space=sflag, size = 0x8, scoped, tag = 'scoped memory for tpu_custom_call.1']
    #allocation4 [shape = 's32[2]{0}', space=sflag, size = 0x8, scoped, tag = 'scoped memory for tpu_custom_call.1']
    #allocation5 [shape = 'u8[303104]{0}', space=vmem, size = 0x4a000, scoped, tag = 'input window, operand 1, single buffered']
    #allocation6 [shape = 's32[1]{0}', space=sflag, size = 0x4, scoped, tag = 'scoped memory for tpu_custom_call.1']
    #allocation7 [shape = 'u8[65536]{0}', space=vmem, size = 0x10000, scoped, tag = 'input window, operand 2, single buffered']
    #allocation8 [shape = 'u8[8192]{0}', space=vmem, size = 0x2000, scoped, tag = 'output window, operand 0']
    %9 = vsyncpa [#allocation3], 0
    %s10 = scalar_lea.sflag [#allocation3], 1
    %11 = vsyncpa %s10, 0
    %12 = vsyncpa [#allocation6], 0
    %13 = vsyncpa [#allocation4], 0
    %s14 = scalar_lea.sflag [#allocation4], 1
    %15 = vsyncpa %s14, 0
    loop: start=0, step=1, limit=6
    $region2: #{tpu_custom_call.1} parent=1 // loop_pre_header
      _
    $region3: #{tpu_custom_call.1} parent=1 // loop_header
      %s17 = sphi 0, %s21
      %p18 = scmp.ge.s32.totalorder %s17, 6
      %s27 = sphi 0, %s29
      %s30 = sphi 0, %s27
      %s31 = sphi 0, %s30
      %s47 = sphi 0, %s31
      %s51 = sphi 0, %s51
      %s53 = sphi 0, %s51
      %s54 = sphi 0, %s53
      %s68 = sphi 0, %s54
      %s72 = sphi 0, %s72
      %s74 = sphi 0, %s72
      %s75 = sphi 0, %s74
      %s89 = sphi 0, %s75
      %s93 = sphi 0, %s93
      %s95 = sphi 0, %s93
      %s96 = sphi 0, %s95
      %s110 = sphi 0, %s96
      %s116 = sphi 0, %s118
      %s119 = sphi 0, %s116
      %s120 = sphi 0, %s119
      %s136 = sphi 0, %s120
    $region4: #{tpu_custom_call.1} parent=1 // loop_header_branch
      %20 = sbr.rel (%p18) target = $region8
    $region5: #{tpu_custom_call.1} parent=1 // loop_body
      %s22 = ssub.s32 %s17, 1
      %s23 = ssub.s32 %s17, 2
      %s24 = sadd.s32 %s17, 1
      %s25 = ssub.s32 %s17, %s24
      %p26 = scmp.eq.s32.totalorder %s25, 0
      %s28 = sadd.s32 %s27, 1
      %s29 = scalar_select %p26, %s27, %s28
      %p32 = pneg %p26
      %p33 = scmp.eq.s32.totalorder %s17, 3
      %p34 = por %p32, %p33
      %p35 = scmp.ne.s32.totalorder %s27, %s30
      %p36 = scmp.eq.s32.totalorder %s17, 0
      %p37 = por %p35, %p36
      %p38 = scmp.ne.s32.totalorder %s27, %s30
      %p39 = scmp.eq.s32.totalorder %s22, 3
      %p40 = por %p38, %p39
      %p41 = scmp.ne.s32.totalorder %s30, %s31
      %p42 = scmp.eq.s32.totalorder %s22, 0
      %p43 = por %p41, %p42
      %p44 = scmp.ne.s32.totalorder %s30, %s31
      %p45 = scmp.eq.s32.totalorder %s23, 3
      %p46 = por %p44, %p45
      %p48 = scmp.ne.s32.totalorder %s31, %s47
      %p49 = scmp.eq.s32.totalorder %s23, 0
      %p50 = por %p48, %p49
      %s52 = sadd.s32 %s51, 1
      %p55 = scmp.eq.s32.totalorder %s17, 3
      %p56 = scmp.ne.s32.totalorder %s51, %s53
      %p57 = scmp.eq.s32.totalorder %s17, 0
      %p58 = por %p56, %p57
      %p59 = scmp.ne.s32.totalorder %s51, %s53
      %p60 = scmp.eq.s32.totalorder %s22, 3
      %p61 = por %p59, %p60
      %p62 = scmp.ne.s32.totalorder %s53, %s54
      %p63 = scmp.eq.s32.totalorder %s22, 0
      %p64 = por %p62, %p63
      %p65 = scmp.ne.s32.totalorder %s53, %s54
      %p66 = scmp.eq.s32.totalorder %s23, 3
      %p67 = por %p65, %p66
      %p69 = scmp.ne.s32.totalorder %s54, %s68
      %p70 = scmp.eq.s32.totalorder %s23, 0
      %p71 = por %p69, %p70
      %s73 = sadd.s32 %s72, 1
      %p76 = scmp.eq.s32.totalorder %s17, 3
      %p77 = scmp.ne.s32.totalorder %s72, %s74
      %p78 = scmp.eq.s32.totalorder %s17, 0
      %p79 = por %p77, %p78
      %p80 = scmp.ne.s32.totalorder %s72, %s74
      %p81 = scmp.eq.s32.totalorder %s22, 3
      %p82 = por %p80, %p81
      %p83 = scmp.ne.s32.totalorder %s74, %s75
      %p84 = scmp.eq.s32.totalorder %s22, 0
      %p85 = por %p83, %p84
      %p86 = scmp.ne.s32.totalorder %s74, %s75
      %p87 = scmp.eq.s32.totalorder %s23, 3
      %p88 = por %p86, %p87
      %p90 = scmp.ne.s32.totalorder %s75, %s89
      %p91 = scmp.eq.s32.totalorder %s23, 0
      %p92 = por %p90, %p91
      %s94 = sadd.s32 %s93, 1
      %p97 = scmp.eq.s32.totalorder %s17, 3
      %p98 = scmp.ne.s32.totalorder %s93, %s95
      %p99 = scmp.eq.s32.totalorder %s17, 0
      %p100 = por %p98, %p99
      %p101 = scmp.ne.s32.totalorder %s93, %s95
      %p102 = scmp.eq.s32.totalorder %s22, 3
      %p103 = por %p101, %p102
      %p104 = scmp.ne.s32.totalorder %s95, %s96
      %p105 = scmp.eq.s32.totalorder %s22, 0
      %p106 = por %p104, %p105
      %p107 = scmp.ne.s32.totalorder %s95, %s96
      %p108 = scmp.eq.s32.totalorder %s23, 3
      %p109 = por %p107, %p108
      %p111 = scmp.ne.s32.totalorder %s96, %s110
      %p112 = scmp.eq.s32.totalorder %s23, 0
      %p113 = por %p111, %p112
      %s114 = ssub.s32 %s17, %s24
      %p115 = scmp.eq.s32.totalorder %s114, 0
      %s117 = sadd.s32 %s116, 1
      %s118 = scalar_select %p115, %s116, %s117
      %p121 = pneg %p115
      %p122 = scmp.eq.s32.totalorder %s17, 3
      %p123 = por %p121, %p122
      %p124 = scmp.ne.s32.totalorder %s116, %s119
      %p125 = scmp.eq.s32.totalorder %s17, 0
      %p126 = por %p124, %p125
      %p127 = scmp.ne.s32.totalorder %s116, %s119
      %p128 = scmp.eq.s32.totalorder %s22, 3
      %p129 = por %p127, %p128
      %p130 = scmp.ne.s32.totalorder %s119, %s120
      %p131 = scmp.eq.s32.totalorder %s22, 0
      %p132 = por %p130, %p131
      %p133 = scmp.ne.s32.totalorder %s119, %s120
      %p134 = scmp.eq.s32.totalorder %s23, 3
      %p135 = por %p133, %p134
      %p137 = scmp.ne.s32.totalorder %s120, %s136
      %p138 = scmp.eq.s32.totalorder %s23, 0
      %p139 = por %p137, %p138
      %p140 = scmp.le.s32.totalorder 1, %s17
      %p141 = scmp.lt.s32.totalorder %s17, 5
      %p142 = pnand %p140, %p141
      %p143 = pneg %p142
      // Predicated region
      $region9: #{tpu_custom_call.1} parent=5 // pred_check
        _
      $region10: #{tpu_custom_call.1} parent=5 // pred_check_branch
        %145 = sbr.rel (%p142) target = $region12
      $region11: #{tpu_custom_call.1} parent=5 // pred_region
        %s146 = ssub.s32 %s17, 1
        // Predicated region
        $region13: #{tpu_custom_call.1} parent=11 // pred_check
          %p147 = pneg %p64
        $region14: #{tpu_custom_call.1} parent=11 // pred_check_branch
          %149 = sbr.rel (%p147) target = $region16
        $region15: #{tpu_custom_call.1} parent=11 // pred_region
          %s151 = ssub.s32 9472, 9472
          %152 = vsyncadd [#allocation6], %s151
          %s153 = sshll.u32 [#allocation5], 4
          %s154 = int_to_ptr.vmem [resolvable:$true] %s153
          %159 = dma.hbm_to_vmem [thread:$0]  %s1, 9472, %s154, [#allocation6], 128, 128, 8
        $region16: #{tpu_custom_call.1} parent=11 // pred_fallthru
          _
        // Predicated region
        $region17: #{tpu_custom_call.1} parent=11 // pred_check
          %p160 = pneg %p85
        $region18: #{tpu_custom_call.1} parent=11 // pred_check_branch
          %162 = sbr.rel (%p160) target = $region20
        $region19: #{tpu_custom_call.1} parent=11 // pred_region
          %s164 = ssub.s32 2048, 2048
          %165 = vsyncadd [#allocation6], %s164
          %s166 = sshll.u32 [#allocation7], 4
          %s167 = int_to_ptr.vmem [resolvable:$true] %s166
          %172 = dma.hbm_to_vmem [thread:$0]  %s2, 2048, %s167, [#allocation6], 128, 128, 8
        $region20: #{tpu_custom_call.1} parent=11 // pred_fallthru
          _
        // Predicated region
        $region21: #{tpu_custom_call.1} parent=11 // pred_check
          %p173 = pneg %p106
        $region22: #{tpu_custom_call.1} parent=11 // pred_check_branch
          %175 = sbr.rel (%p173) target = $region24
        $region23: #{tpu_custom_call.1} parent=11 // pred_region
          _
        $region24: #{tpu_custom_call.1} parent=11 // pred_fallthru
          _
      $region12: #{tpu_custom_call.1} parent=5 // pred_fallthru
        _
      %p176 = scmp.lt.s32.totalorder %s17, 4
      // Predicated region
      $region25: #{tpu_custom_call.1} parent=5 // pred_check
        %p177 = pneg %p176
      $region26: #{tpu_custom_call.1} parent=5 // pred_check_branch
        %179 = sbr.rel (%p177) target = $region28
      $region27: #{tpu_custom_call.1} parent=5 // pred_region
        // Predicated region
        $region29: #{tpu_custom_call.1} parent=27 // pred_check
          %p180 = pneg %p37
        $region30: #{tpu_custom_call.1} parent=27 // pred_check_branch
          %182 = sbr.rel (%p180) target = $region32
        $region31: #{tpu_custom_call.1} parent=27 // pred_region
          %s183 = sand.u32 %s27, 1
          %s184 = scalar_lea.sflag [#allocation3], %s183
          %s185 = sand.u32 %s27, 1
          %s186 = smul.addr %s185, 40
          %s187 = scalar_lea.vmem [#allocation2], %s186
          %s189 = ssub.s32 640, 640
          %190 = vsyncadd %s184, %s189
          %s191 = smul.addr %s17, 5
          %s192 = smul.addr %s191, 128
          %s193 = scalar_lea.hbm %s0, %s192
          %s195 = sshll.u32 %s187, 4
          %s196 = int_to_ptr.vmem [resolvable:$true] %s195
          %198 = dma.hbm_to_vmem [thread:$0]  %s193, 640, %s196, %s184
        $region32: #{tpu_custom_call.1} parent=27 // pred_fallthru
          _
      $region28: #{tpu_custom_call.1} parent=5 // pred_fallthru
        _
      %p199 = scmp.le.s32.totalorder 1, %s17
      %p200 = scmp.lt.s32.totalorder %s17, 5
      %p201 = pnand %p199, %p200
      %p202 = pneg %p201
      // Predicated region
      $region33: #{tpu_custom_call.1} parent=5 // pred_check
        _
      $region34: #{tpu_custom_call.1} parent=5 // pred_check_branch
        %204 = sbr.rel (%p201) target = $region36
      $region35: #{tpu_custom_call.1} parent=5 // pred_region
        %s205 = ssub.s32 %s17, 1
        %s206 = sand.u32 %s30, 1
        %s207 = scalar_lea.sflag [#allocation3], %s206
        %s208 = sand.u32 %s30, 1
        %s209 = smul.addr %s208, 40
        %s210 = scalar_lea.vmem [#allocation2], %s209
        // Predicated region
        $region37: #{tpu_custom_call.1} parent=35 // pred_check
          %p211 = pneg %p43
        $region38: #{tpu_custom_call.1} parent=35 // pred_check_branch
          %213 = sbr.rel (%p211) target = $region40
        $region39: #{tpu_custom_call.1} parent=35 // pred_region
          %214 = dma.done %s207, 640
        $region40: #{tpu_custom_call.1} parent=35 // pred_fallthru
          _
        // Predicated region
        $region41: #{tpu_custom_call.1} parent=35 // pred_check
          %p215 = pneg %p64
        $region42: #{tpu_custom_call.1} parent=35 // pred_check_branch
          %217 = sbr.rel (%p215) target = $region44
        $region43: #{tpu_custom_call.1} parent=35 // pred_region
          %218 = dma.done [#allocation6], 9472
        $region44: #{tpu_custom_call.1} parent=35 // pred_fallthru
          _
        // Predicated region
        $region45: #{tpu_custom_call.1} parent=35 // pred_check
          %p219 = pneg %p85
        $region46: #{tpu_custom_call.1} parent=35 // pred_check_branch
          %221 = sbr.rel (%p219) target = $region48
        $region47: #{tpu_custom_call.1} parent=35 // pred_region
          %222 = dma.done [#allocation6], 2048
        $region48: #{tpu_custom_call.1} parent=35 // pred_fallthru
          _
        %s223 = sand.u32 %s30, 1
        %s224 = scalar_lea.sflag [#allocation3], %s223
        %s225 = sand.u32 %s30, 1
        %s226 = smul.addr %s225, 40
        %s227 = scalar_lea.vmem [#allocation2], %s226
        %p228 = pneg %p43
        %p229 = pneg %p40
        %p230 = pneg %p64
        %p231 = pneg %p61
        %p232 = pneg %p85
        %p233 = pneg %p82
        %p234 = pneg %p106
        %p235 = pneg %p103
        %p236 = pneg %p132
        %p237 = pneg %p129
        %s238 = sand.u32 %s119, 1
        %s239 = scalar_lea.sflag [#allocation4], %s238
        %s240 = sand.u32 %s119, 1
        %s241 = smul.addr %s240, 8
        %s242 = scalar_lea.vmem [#allocation8], %s241
        %v243 = vld [vmem:[%s210] sm:$0xff]
        %v244 = vld [vmem:[%s210 + $0x8] sm:$0xff]
        %v245 = vld [vmem:[%s210 + $0x10] sm:$0xff]
        %v246 = vld [vmem:[%s210 + $0x18] sm:$0xff]
        %v247 = vld [vmem:[%s210 + $0x20] sm:$0xff]
        %v248 = vld [vmem:[#allocation5] sm:$0xff]
        %v249 = vld [vmem:[#allocation5 + $0x8] sm:$0xff]
        %v250 = vld [vmem:[#allocation5 + $0x10] sm:$0xff]
        %v251 = vld [vmem:[#allocation5 + $0x18] sm:$0xff]
        %v252 = vld [vmem:[#allocation5 + $0x20] sm:$0xff]
        %v253 = vld [vmem:[#allocation5 + $0x28] sm:$0xff]
        %v254 = vld [vmem:[#allocation5 + $0x30] sm:$0xff]
        %v255 = vld [vmem:[#allocation5 + $0x38] sm:$0xff]
        %v256 = vld [vmem:[#allocation5 + $0x40] sm:$0xff]
        %v257 = vld [vmem:[#allocation5 + $0x48] sm:$0xff]
        %v258 = vld [vmem:[#allocation5 + $0x50] sm:$0xff]
        %v259 = vld [vmem:[#allocation5 + $0x58] sm:$0xff]
        %v260 = vld [vmem:[#allocation5 + $0x60] sm:$0xff]
        %v261 = vld [vmem:[#allocation5 + $0x68] sm:$0xff]
        %v262 = vld [vmem:[#allocation5 + $0x70] sm:$0xff]
        %v263 = vld [vmem:[#allocation5 + $0x78] sm:$0xff]
        %v264 = vld [vmem:[#allocation5 + $0x80] sm:$0xff]
        %v265 = vld [vmem:[#allocation5 + $0x88] sm:$0xff]
        %v266 = vld [vmem:[#allocation5 + $0x90] sm:$0xff]
        %v267 = vld [vmem:[#allocation5 + $0x98] sm:$0xff]
        %v268 = vld [vmem:[#allocation5 + $0xa0] sm:$0xff]
        %v269 = vld [vmem:[#allocation5 + $0xa8] sm:$0xff]
        %v270 = vld [vmem:[#allocation5 + $0xb0] sm:$0xff]
        %v271 = vld [vmem:[#allocation5 + $0xb8] sm:$0xff]
        %v272 = vld [vmem:[#allocation5 + $0xc0] sm:$0xff]
        %v273 = vld [vmem:[#allocation5 + $0xc8] sm:$0xff]
        %v274 = vld [vmem:[#allocation5 + $0xd0] sm:$0xff]
        %v275 = vld [vmem:[#allocation5 + $0xd8] sm:$0xff]
        %v276 = vld [vmem:[#allocation5 + $0xe0] sm:$0xff]
        %v277 = vld [vmem:[#allocation5 + $0xe8] sm:$0xff]
        %v278 = vld [vmem:[#allocation5 + $0xf0] sm:$0xff]
        %v279 = vld [vmem:[#allocation5 + $0xf8] sm:$0xff]
        %v280 = vld [vmem:[#allocation5 + $0x100] sm:$0xff]
        %v281 = vld [vmem:[#allocation5 + $0x108] sm:$0xff]
        %v282 = vld [vmem:[#allocation5 + $0x110] sm:$0xff]
        %v283 = vld [vmem:[#allocation5 + $0x118] sm:$0xff]
        %v284 = vld [vmem:[#allocation5 + $0x120] sm:$0xff]
        %v285 = vld [vmem:[#allocation5 + $0x128] sm:$0xff]
        %v286 = vld [vmem:[#allocation5 + $0x130] sm:$0xff]
        %v287 = vld [vmem:[#allocation5 + $0x138] sm:$0xff]
        %v288 = vld [vmem:[#allocation5 + $0x140] sm:$0xff]
        %v289 = vld [vmem:[#allocation5 + $0x148] sm:$0xff]
        %v290 = vld [vmem:[#allocation5 + $0x150] sm:$0xff]
        %v291 = vld [vmem:[#allocation5 + $0x158] sm:$0xff]
        %v292 = vld [vmem:[#allocation5 + $0x160] sm:$0xff]
        %v293 = vld [vmem:[#allocation5 + $0x168] sm:$0xff]
        %v294 = vld [vmem:[#allocation5 + $0x170] sm:$0xff]
        %v295 = vld [vmem:[#allocation5 + $0x178] sm:$0xff]
        %v296 = vld [vmem:[#allocation5 + $0x180] sm:$0xff]
        %v297 = vld [vmem:[#allocation5 + $0x188] sm:$0xff]
        %v298 = vld [vmem:[#allocation5 + $0x190] sm:$0xff]
        %v299 = vld [vmem:[#allocation5 + $0x198] sm:$0xff]
        %v300 = vld [vmem:[#allocation5 + $0x1a0] sm:$0xff]
        %v301 = vld [vmem:[#allocation5 + $0x1a8] sm:$0xff]
        %v302 = vld [vmem:[#allocation5 + $0x1b0] sm:$0xff]
        %v303 = vld [vmem:[#allocation5 + $0x1b8] sm:$0xff]
        %v304 = vld [vmem:[#allocation5 + $0x1c0] sm:$0xff]
        %v305 = vld [vmem:[#allocation5 + $0x1c8] sm:$0xff]
        %v306 = vld [vmem:[#allocation5 + $0x1d0] sm:$0xff]
        %v307 = vld [vmem:[#allocation5 + $0x1d8] sm:$0xff]
        %v308 = vld [vmem:[#allocation5 + $0x1e0] sm:$0xff]
        %v309 = vld [vmem:[#allocation5 + $0x1e8] sm:$0xff]
        %v310 = vld [vmem:[#allocation5 + $0x1f0] sm:$0xff]
        %v311 = vld [vmem:[#allocation5 + $0x1f8] sm:$0xff]
        %v312 = vld [vmem:[#allocation5 + $0x200] sm:$0xff]
        %v313 = vld [vmem:[#allocation5 + $0x208] sm:$0xff]
        %v314 = vld [vmem:[#allocation5 + $0x210] sm:$0xff]
        %v315 = vld [vmem:[#allocation5 + $0x218] sm:$0xff]
        %v316 = vld [vmem:[#allocation5 + $0x220] sm:$0xff]
        %v317 = vld [vmem:[#allocation5 + $0x228] sm:$0xff]
        %v318 = vld [vmem:[#allocation5 + $0x230] sm:$0xff]
        %v319 = vld [vmem:[#allocation5 + $0x238] sm:$0xff]
        %v320 = vld [vmem:[#allocation5 + $0x240] sm:$0xff]
        %v321 = vld [vmem:[#allocation5 + $0x248] sm:$0xf]
        %v322 = vld [vmem:[%s3] sm:$0xff]
        %v323 = vlaneseq
        %v324 = vshrl.u32 %v323, 7
        %v325 = vsub.s32 0, %v324
        %v326 = vrot.slane %v322, %v325
        %vm327 = vcmask 621568
        %v329 = vsel %vm327, %v247, 0
        %vm331 = vcmask 1043456
        %v333 = vsel %vm331, %v321, 0
        %335 = vmatprep.subr.mxu0 0.0
        %336 = vmatpush1.msra.mxu0 %v248
        %337 = vmatprep.subr.mxu0 0.0
        %338 = vmatpush1.msra.mxu0 %v249
        %339 = vmatprep.subr.mxu0 0.0
        %340 = vmatpush1.msra.mxu0 %v250
        %341 = vmatprep.subr.mxu0 0.0
        %342 = vmatpush1.msra.mxu0 %v251
        %343 = vmatprep.subr.mxu0 0.0
        %344 = vmatpush1.msra.mxu0 %v252
        %345 = vmatprep.subr.mxu0 0.0
        %346 = vmatpush1.msra.mxu0 %v253
        %347 = vmatprep.subr.mxu0 0.0
        %348 = vmatpush1.msra.mxu0 %v254
        %349 = vmatprep.subr.mxu0 0.0
        %350 = vmatpush1.msra.mxu0 %v255
        %351 = vmatprep.subr.mxu0 0.0
        %352 = vmatpush1.msra.mxu0 %v256
        %353 = vmatprep.subr.mxu0 0.0
        %354 = vmatpush1.msra.mxu0 %v257
        %355 = vmatprep.subr.mxu0 0.0
        %356 = vmatpush1.msra.mxu0 %v258
        %357 = vmatprep.subr.mxu0 0.0
        %358 = vmatpush1.msra.mxu0 %v259
        %359 = vmatprep.subr.mxu0 0.0
        %360 = vmatpush1.msra.mxu0 %v260
        %361 = vmatprep.subr.mxu0 0.0
        %362 = vmatpush1.msra.mxu0 %v261
        %363 = vmatprep.subr.mxu0 0.0
        %364 = vmatpush1.msra.mxu0 %v262
        %365 = vmatprep.subr.mxu0 0.0
        %366 = vmatpush1.msra.mxu0 %v263
        %367 = vmatprep.subr.mxu0 0.0
        %368 = vmatpush1.msra.mxu0 %v264
        %369 = vmatprep.subr.mxu0 0.0
        %370 = vmatpush1.msra.mxu0 %v265
        %371 = vmatprep.subr.mxu0 0.0
        %372 = vmatpush1.msra.mxu0 %v266
        %373 = vmatprep.subr.mxu0 0.0
        %374 = vmatpush1.msra.mxu0 %v267
        %375 = vmatprep.subr.mxu0 0.0
        %376 = vmatpush1.msra.mxu0 %v268
        %377 = vmatprep.subr.mxu0 0.0
        %378 = vmatpush1.msra.mxu0 %v269
        %379 = vmatprep.subr.mxu0 0.0
        %380 = vmatpush1.msra.mxu0 %v270
        %381 = vmatprep.subr.mxu0 0.0
        %382 = vmatpush1.msra.mxu0 %v271
        %383 = vmatprep.subr.mxu0 0.0
        %384 = vmatpush1.msra.mxu0 %v272
        %385 = vmatprep.subr.mxu0 0.0
        %386 = vmatpush1.msra.mxu0 %v273
        %387 = vmatprep.subr.mxu0 0.0
        %388 = vmatpush1.msra.mxu0 %v274
        %389 = vmatprep.subr.mxu0 0.0
        %390 = vmatpush1.msra.mxu0 %v275
        %391 = vmatprep.subr.mxu0 0.0
        %392 = vmatpush1.msra.mxu0 %v276
        %393 = vmatprep.subr.mxu0 0.0
        %394 = vmatpush1.msra.mxu0 %v277
        %395 = vmatprep.subr.mxu0 0.0
        %396 = vmatpush1.msra.mxu0 %v278
        %397 = vmatprep.subr.mxu0 0.0
        %398 = vmatpush1.msra.mxu0 %v279
        %399 = vmatprep.mubr.f32.mxu0 %v244
        %400 = vmatmul.mubr.f32.gmra.mrb[0].mxu0 %v243
        %v401 = vpop.f32.mrb[0].mxu0
        %v402 = vadd.f32 %v326, %v401
        %v403 = vpop.f32.mrb[0].mxu0
        %404 = vdwg.mxu0
        %405 = vmatprep.subr.mxu0 0.0
        %406 = vmatpush1.msra.mxu0 %v280
        %407 = vmatprep.subr.mxu0 0.0
        %408 = vmatpush1.msra.mxu0 %v281
        %409 = vmatprep.subr.mxu0 0.0
        %410 = vmatpush1.msra.mxu0 %v282
        %411 = vmatprep.subr.mxu0 0.0
        %412 = vmatpush1.msra.mxu0 %v283
        %413 = vmatprep.subr.mxu0 0.0
        %414 = vmatpush1.msra.mxu0 %v284
        %415 = vmatprep.subr.mxu0 0.0
        %416 = vmatpush1.msra.mxu0 %v285
        %417 = vmatprep.subr.mxu0 0.0
        %418 = vmatpush1.msra.mxu0 %v286
        %419 = vmatprep.subr.mxu0 0.0
        %420 = vmatpush1.msra.mxu0 %v287
        %421 = vmatprep.subr.mxu0 0.0
        %422 = vmatpush1.msra.mxu0 %v288
        %423 = vmatprep.subr.mxu0 0.0
        %424 = vmatpush1.msra.mxu0 %v289
        %425 = vmatprep.subr.mxu0 0.0
        %426 = vmatpush1.msra.mxu0 %v290
        %427 = vmatprep.subr.mxu0 0.0
        %428 = vmatpush1.msra.mxu0 %v291
        %429 = vmatprep.subr.mxu0 0.0
        %430 = vmatpush1.msra.mxu0 %v292
        %431 = vmatprep.subr.mxu0 0.0
        %432 = vmatpush1.msra.mxu0 %v293
        %433 = vmatprep.subr.mxu0 0.0
        %434 = vmatpush1.msra.mxu0 %v294
        %435 = vmatprep.subr.mxu0 0.0
        %436 = vmatpush1.msra.mxu0 %v295
        %437 = vmatprep.subr.mxu0 0.0
        %438 = vmatpush1.msra.mxu0 %v296
        %439 = vmatprep.subr.mxu0 0.0
        %440 = vmatpush1.msra.mxu0 %v297
        %441 = vmatprep.subr.mxu0 0.0
        %442 = vmatpush1.msra.mxu0 %v298
        %443 = vmatprep.subr.mxu0 0.0
        %444 = vmatpush1.msra.mxu0 %v299
        %445 = vmatprep.subr.mxu0 0.0
        %446 = vmatpush1.msra.mxu0 %v300
        %447 = vmatprep.subr.mxu0 0.0
        %448 = vmatpush1.msra.mxu0 %v301
        %449 = vmatprep.subr.mxu0 0.0
        %450 = vmatpush1.msra.mxu0 %v302
        %451 = vmatprep.subr.mxu0 0.0
        %452 = vmatpush1.msra.mxu0 %v303
        %453 = vmatprep.subr.mxu0 0.0
        %454 = vmatpush1.msra.mxu0 %v304
        %455 = vmatprep.subr.mxu0 0.0
        %456 = vmatpush1.msra.mxu0 %v305
        %457 = vmatprep.subr.mxu0 0.0
        %458 = vmatpush1.msra.mxu0 %v306
        %459 = vmatprep.subr.mxu0 0.0
        %460 = vmatpush1.msra.mxu0 %v307
        %461 = vmatprep.subr.mxu0 0.0
        %462 = vmatpush1.msra.mxu0 %v308
        %463 = vmatprep.subr.mxu0 0.0
        %464 = vmatpush1.msra.mxu0 %v309
        %465 = vmatprep.subr.mxu0 0.0
        %466 = vmatpush1.msra.mxu0 %v310
        %467 = vmatprep.subr.mxu0 0.0
        %468 = vmatpush1.msra.mxu0 %v311
        %469 = vmatprep.mubr.f32.mxu0 %v246
        %470 = vmatmul.mubr.f32.gmra.mrb[0].mxu0 %v245
        %v471 = vpop.f32.mrb[0].mxu0
        %v472 = vadd.f32 %v402, %v471
        %v473 = vpop.f32.mrb[0].mxu0
        %474 = vdwg.mxu0
        %475 = vmatprep.subr.mxu0 0.0
        %476 = vmatpush1.msra.mxu0 %v312
        %477 = vmatprep.subr.mxu0 0.0
        %478 = vmatpush1.msra.mxu0 %v313
        %479 = vmatprep.subr.mxu0 0.0
        %480 = vmatpush1.msra.mxu0 %v314
        %481 = vmatprep.subr.mxu0 0.0
        %482 = vmatpush1.msra.mxu0 %v315
        %483 = vmatprep.subr.mxu0 0.0
        %484 = vmatpush1.msra.mxu0 %v316
        %485 = vmatprep.subr.mxu0 0.0
        %486 = vmatpush1.msra.mxu0 %v317
        %487 = vmatprep.subr.mxu0 0.0
        %488 = vmatpush1.msra.mxu0 %v318
        %489 = vmatprep.subr.mxu0 0.0
        %490 = vmatpush1.msra.mxu0 %v319
        %491 = vmatprep.subr.mxu0 0.0
        %492 = vmatpush1.msra.mxu0 %v320
        %493 = vmatprep.subr.mxu0 0.0
        %494 = vmatpush1.msra.mxu0 %v333
        %495 = vmatprep.subr.mxu0 0.0
        %496 = vmatpush1.msra.mxu0 0.0
        %497 = vmatprep.subr.mxu0 0.0
        %498 = vmatpush1.msra.mxu0 0.0
        %499 = vmatprep.subr.mxu0 0.0
        %500 = vmatpush1.msra.mxu0 0.0
        %501 = vmatprep.subr.mxu0 0.0
        %502 = vmatpush1.msra.mxu0 0.0
        %503 = vmatprep.subr.mxu0 0.0
        %504 = vmatpush1.msra.mxu0 0.0
        %505 = vmatprep.subr.mxu0 0.0
        %506 = vmatpush1.msra.mxu0 0.0
        %507 = vmatprep.subr.mxu0 0.0
        %508 = vmatpush1.msra.mxu0 0.0
        %509 = vmatprep.subr.mxu0 0.0
        %510 = vmatpush1.msra.mxu0 0.0
        %511 = vmatprep.subr.mxu0 0.0
        %512 = vmatpush1.msra.mxu0 0.0
        %513 = vmatprep.subr.mxu0 0.0
        %514 = vmatpush1.msra.mxu0 0.0
        %515 = vmatprep.subr.mxu0 0.0
        %516 = vmatpush1.msra.mxu0 0.0
        %517 = vmatprep.subr.mxu0 0.0
        %518 = vmatpush1.msra.mxu0 0.0
        %519 = vmatprep.subr.mxu0 0.0
        %520 = vmatpush1.msra.mxu0 0.0
        %521 = vmatprep.subr.mxu0 0.0
        %522 = vmatpush1.msra.mxu0 0.0
        %523 = vmatprep.subr.mxu0 0.0
        %524 = vmatpush1.msra.mxu0 0.0
        %525 = vmatprep.subr.mxu0 0.0
        %526 = vmatpush1.msra.mxu0 0.0
        %527 = vmatprep.subr.mxu0 0.0
        %528 = vmatpush1.msra.mxu0 0.0
        %529 = vmatprep.subr.mxu0 0.0
        %530 = vmatpush1.msra.mxu0 0.0
        %531 = vmatprep.subr.mxu0 0.0
        %532 = vmatpush1.msra.mxu0 0.0
        %533 = vmatprep.subr.mxu0 0.0
        %534 = vmatpush1.msra.mxu0 0.0
        %535 = vmatprep.subr.mxu0 0.0
        %536 = vmatpush1.msra.mxu0 0.0
        %537 = vmatprep.subr.mxu0 0.0
        %538 = vmatpush1.msra.mxu0 0.0
        %539 = vmatprep.mubr.f32.mxu0 0.0
        %540 = vmatmul.mubr.f32.gmra.mrb[0].mxu0 %v329
        %v541 = vpop.f32.mrb[0].mxu0
        %v542 = vadd.f32 %v472, %v541
        %v543 = vpop.f32.mrb[0].mxu0
        %544 = vdwg.mxu0
        %v545 = vld [vmem:[#allocation7] sm:$0xff]
        %v546 = vld [vmem:[#allocation7 + $0x8] sm:$0xff]
        %v547 = vld [vmem:[#allocation7 + $0x10] sm:$0xff]
        %v548 = vld [vmem:[#allocation7 + $0x18] sm:$0xff]
        %v549 = vld [vmem:[#allocation7 + $0x20] sm:$0xff]
        %v550 = vld [vmem:[#allocation7 + $0x28] sm:$0xff]
        %v551 = vld [vmem:[#allocation7 + $0x30] sm:$0xff]
        %v552 = vld [vmem:[#allocation7 + $0x38] sm:$0xff]
        %v553 = vld [vmem:[#allocation7 + $0x40] sm:$0xff]
        %v554 = vld [vmem:[#allocation7 + $0x48] sm:$0xff]
        %v555 = vld [vmem:[#allocation7 + $0x50] sm:$0xff]
        %v556 = vld [vmem:[#allocation7 + $0x58] sm:$0xff]
        %v557 = vld [vmem:[#allocation7 + $0x60] sm:$0xff]
        %v558 = vld [vmem:[#allocation7 + $0x68] sm:$0xff]
        %v559 = vld [vmem:[#allocation7 + $0x70] sm:$0xff]
        %v560 = vld [vmem:[#allocation7 + $0x78] sm:$0xff]
        %561 = vmatprep.subr.mxu0 0.0
        %562 = vmatpush1.msra.mxu0 %v545
        %563 = vmatprep.subr.mxu0 0.0
        %564 = vmatpush1.msra.mxu0 %v546
        %565 = vmatprep.subr.mxu0 0.0
        %566 = vmatpush1.msra.mxu0 %v547
        %567 = vmatprep.subr.mxu0 0.0
        %568 = vmatpush1.msra.mxu0 %v548
        %569 = vmatprep.subr.mxu0 0.0
        %570 = vmatpush1.msra.mxu0 %v549
        %571 = vmatprep.subr.mxu0 0.0
        %572 = vmatpush1.msra.mxu0 %v550
        %573 = vmatprep.subr.mxu0 0.0
        %574 = vmatpush1.msra.mxu0 %v551
        %575 = vmatprep.subr.mxu0 0.0
        %576 = vmatpush1.msra.mxu0 %v552
        %577 = vmatprep.subr.mxu0 0.0
        %578 = vmatpush1.msra.mxu0 %v553
        %579 = vmatprep.subr.mxu0 0.0
        %580 = vmatpush1.msra.mxu0 %v554
        %581 = vmatprep.subr.mxu0 0.0
        %582 = vmatpush1.msra.mxu0 %v555
        %583 = vmatprep.subr.mxu0 0.0
        %584 = vmatpush1.msra.mxu0 %v556
        %585 = vmatprep.subr.mxu0 0.0
        %586 = vmatpush1.msra.mxu0 %v557
        %587 = vmatprep.subr.mxu0 0.0
        %588 = vmatpush1.msra.mxu0 %v558
        %589 = vmatprep.subr.mxu0 0.0
        %590 = vmatpush1.msra.mxu0 %v559
        %591 = vmatprep.subr.mxu0 0.0
        %592 = vmatpush1.msra.mxu0 %v560
        %593 = vmatprep.subr.mxu0 0.0
        %594 = vmatpush1.msra.mxu0 0.0
        %595 = vmatprep.subr.mxu0 0.0
        %596 = vmatpush1.msra.mxu0 0.0
        %597 = vmatprep.subr.mxu0 0.0
        %598 = vmatpush1.msra.mxu0 0.0
        %599 = vmatprep.subr.mxu0 0.0
        %600 = vmatpush1.msra.mxu0 0.0
        %601 = vmatprep.subr.mxu0 0.0
        %602 = vmatpush1.msra.mxu0 0.0
        %603 = vmatprep.subr.mxu0 0.0
        %604 = vmatpush1.msra.mxu0 0.0
        %605 = vmatprep.subr.mxu0 0.0
        %606 = vmatpush1.msra.mxu0 0.0
        %607 = vmatprep.subr.mxu0 0.0
        %608 = vmatpush1.msra.mxu0 0.0
        %609 = vmatprep.subr.mxu0 0.0
        %610 = vmatpush1.msra.mxu0 0.0
        %611 = vmatprep.subr.mxu0 0.0
        %612 = vmatpush1.msra.mxu0 0.0
        %613 = vmatprep.subr.mxu0 0.0
        %614 = vmatpush1.msra.mxu0 0.0
        %615 = vmatprep.subr.mxu0 0.0
        %616 = vmatpush1.msra.mxu0 0.0
        %617 = vmatprep.subr.mxu0 0.0
        %618 = vmatpush1.msra.mxu0 0.0
        %619 = vmatprep.subr.mxu0 0.0
        %620 = vmatpush1.msra.mxu0 0.0
        %621 = vmatprep.subr.mxu0 0.0
        %622 = vmatpush1.msra.mxu0 0.0
        %623 = vmatprep.subr.mxu0 0.0
        %624 = vmatpush1.msra.mxu0 0.0
        %625 = vmatprep.mubr.f32.mxu0 0.0
        %626 = vmatmul.mubr.f32.gmra.mrb[0].mxu0 %v542
        %v627 = vpop.f32.mrb[0].mxu0
        %v628 = vadd.f32 0.0, %v627
        %v629 = vpop.f32.mrb[0].mxu0
        %630 = vdwg.mxu0
        %v631 = vmul.f32 %v628, 0.03125
        %v632 = vsub.f32 %v542, %v631
        %v633 = vmul.f32 %v632, %v632
        %634 = vmatprep.subr.mxu0 0.0
        %635 = vmatpush1.msra.mxu0 %v545
        %636 = vmatprep.subr.mxu0 0.0
        %637 = vmatpush1.msra.mxu0 %v546
        %638 = vmatprep.subr.mxu0 0.0
        %639 = vmatpush1.msra.mxu0 %v547
        %640 = vmatprep.subr.mxu0 0.0
        %641 = vmatpush1.msra.mxu0 %v548
        %642 = vmatprep.subr.mxu0 0.0
        %643 = vmatpush1.msra.mxu0 %v549
        %644 = vmatprep.subr.mxu0 0.0
        %645 = vmatpush1.msra.mxu0 %v550
        %646 = vmatprep.subr.mxu0 0.0
        %647 = vmatpush1.msra.mxu0 %v551
        %648 = vmatprep.subr.mxu0 0.0
        %649 = vmatpush1.msra.mxu0 %v552
        %650 = vmatprep.subr.mxu0 0.0
        %651 = vmatpush1.msra.mxu0 %v553
        %652 = vmatprep.subr.mxu0 0.0
        %653 = vmatpush1.msra.mxu0 %v554
        %654 = vmatprep.subr.mxu0 0.0
        %655 = vmatpush1.msra.mxu0 %v555
        %656 = vmatprep.subr.mxu0 0.0
        %657 = vmatpush1.msra.mxu0 %v556
        %658 = vmatprep.subr.mxu0 0.0
        %659 = vmatpush1.msra.mxu0 %v557
        %660 = vmatprep.subr.mxu0 0.0
        %661 = vmatpush1.msra.mxu0 %v558
        %662 = vmatprep.subr.mxu0 0.0
        %663 = vmatpush1.msra.mxu0 %v559
        %664 = vmatprep.subr.mxu0 0.0
        %665 = vmatpush1.msra.mxu0 %v560
        %666 = vmatprep.subr.mxu0 0.0
        %667 = vmatpush1.msra.mxu0 0.0
        %668 = vmatprep.subr.mxu0 0.0
        %669 = vmatpush1.msra.mxu0 0.0
        %670 = vmatprep.subr.mxu0 0.0
        %671 = vmatpush1.msra.mxu0 0.0
        %672 = vmatprep.subr.mxu0 0.0
        %673 = vmatpush1.msra.mxu0 0.0
        %674 = vmatprep.subr.mxu0 0.0
        %675 = vmatpush1.msra.mxu0 0.0
        %676 = vmatprep.subr.mxu0 0.0
        %677 = vmatpush1.msra.mxu0 0.0
        %678 = vmatprep.subr.mxu0 0.0
        %679 = vmatpush1.msra.mxu0 0.0
        %680 = vmatprep.subr.mxu0 0.0
        %681 = vmatpush1.msra.mxu0 0.0
        %682 = vmatprep.subr.mxu0 0.0
        %683 = vmatpush1.msra.mxu0 0.0
        %684 = vmatprep.subr.mxu0 0.0
        %685 = vmatpush1.msra.mxu0 0.0
        %686 = vmatprep.subr.mxu0 0.0
        %687 = vmatpush1.msra.mxu0 0.0
        %688 = vmatprep.subr.mxu0 0.0
        %689 = vmatpush1.msra.mxu0 0.0
        %690 = vmatprep.subr.mxu0 0.0
        %691 = vmatpush1.msra.mxu0 0.0
        %692 = vmatprep.subr.mxu0 0.0
        %693 = vmatpush1.msra.mxu0 0.0
        %694 = vmatprep.subr.mxu0 0.0
        %695 = vmatpush1.msra.mxu0 0.0
        %696 = vmatprep.subr.mxu0 0.0
        %697 = vmatpush1.msra.mxu0 0.0
        %698 = vmatprep.mubr.f32.mxu0 0.0
        %699 = vmatmul.mubr.f32.gmra.mrb[0].mxu0 %v633
        %v700 = vpop.f32.mrb[0].mxu0
        %v701 = vadd.f32 0.0, %v700
        %v702 = vpop.f32.mrb[0].mxu0
        %703 = vdwg.mxu0
        %v704 = vmul.f32 %v701, 0.03125
        %v705 = vadd.f32 %v704, 1e-05
        %v706 = vrsqrt.pop %v705
        %v707 = vmul.f32 %v632, %v706
        %v708 = vlaneseq
        %v709 = vshrl.u32 %v708, 7
        %v710 = vsub.s32 1, %v709
        %v711 = vrot.slane %v322, %v710
        %v712 = vmul.f32 %v707, %v711
        %v713 = vlaneseq
        %v714 = vshrl.u32 %v713, 7
        %v715 = vsub.s32 2, %v714
        %v716 = vrot.slane %v322, %v715
        %v717 = vadd.f32 %v712, %v716
        %718 = vst [vmem:[%s242] sm:$0xff] %v717
        %s719 = sand.u32 %s119, 1
        %s720 = scalar_lea.sflag [#allocation4], %s719
        %s721 = sand.u32 %s119, 1
        %s722 = smul.addr %s721, 8
        %s723 = scalar_lea.vmem [#allocation8], %s722
        // Predicated region
        $region49: #{tpu_custom_call.1} parent=35 // pred_check
          %p724 = pneg %p129
        $region50: #{tpu_custom_call.1} parent=35 // pred_check_branch
          %726 = sbr.rel (%p724) target = $region52
        $region51: #{tpu_custom_call.1} parent=35 // pred_region
          %s728 = ssub.s32 128, 128
          %729 = vsyncadd %s720, %s728
          %s730 = smul.addr %s22, 128
          %s731 = scalar_lea.hbm %s4, %s730
          %s733 = sshll.u32 %s723, 4
          %s734 = int_to_ptr.vmem [resolvable:$true] %s733
          %736 = dma.vmem_to_hbm [thread:$0]  %s734, 128, %s731, %s720
        $region52: #{tpu_custom_call.1} parent=35 // pred_fallthru
          _
      $region36: #{tpu_custom_call.1} parent=5 // pred_fallthru
        _
      %p737 = scmp.le.s32.totalorder 2, %s17
      // Predicated region
      $region53: #{tpu_custom_call.1} parent=5 // pred_check
        %p738 = pneg %p737
      $region54: #{tpu_custom_call.1} parent=5 // pred_check_branch
        %740 = sbr.rel (%p738) target = $region56
      $region55: #{tpu_custom_call.1} parent=5 // pred_region
        %s741 = ssub.s32 %s17, 2
        // Predicated region
        $region57: #{tpu_custom_call.1} parent=55 // pred_check
          %p742 = pneg %p135
        $region58: #{tpu_custom_call.1} parent=55 // pred_check_branch
          %744 = sbr.rel (%p742) target = $region60
        $region59: #{tpu_custom_call.1} parent=55 // pred_region
          %s745 = sand.u32 %s120, 1
          %s746 = scalar_lea.sflag [#allocation4], %s745
          %s747 = sand.u32 %s120, 1
          %s748 = smul.addr %s747, 8
          %s749 = scalar_lea.vmem [#allocation8], %s748
          %750 = dma.done %s746, 128
        $region60: #{tpu_custom_call.1} parent=55 // pred_fallthru
          _
      $region56: #{tpu_custom_call.1} parent=5 // pred_fallthru
        _
    $region6: #{tpu_custom_call.1} parent=1 // loop_footer
      %s21 = sadd.s32 1, %s17
    $region7: #{tpu_custom_call.1} parent=1 // loop_footer_branch
      %16 = sbr.rel target = $region3
    $region8: #{tpu_custom_call.1} parent=1 // loop_exit
      _
    %751 = vsyncpa [#allocation3], 1
    %s752 = scalar_lea.sflag [#allocation3], 1
    %753 = vsyncpa %s752, 1
    %754 = vsyncpa [#allocation6], 1
    %755 = vsyncpa [#allocation4], 1
    %s756 = scalar_lea.sflag [#allocation4], 1
    %757 = vsyncpa %s756, 1

</llo_original>
